<compile_context>
chip_gen: v6e
topology: v6e:2x2x1
jax: 0.10.0
libtpu: 0.0.40
codegen_flags: <defaults>
</compile_context>

<pallas_src>
import jax
import jax.numpy as jnp
from jax.experimental import pallas as pl
from jax.experimental.pallas import tpu as pltpu


def linear_vpu_kernel(x_ref, w_ref, b_ref, o_ref):
    # x_ref: (in_f, TB)  VMEM  — features on sublanes, batch on lanes.
    # w_ref: (out_f, in_f) SMEM — PyTorch nn.Linear layout (out, in).
    # b_ref: (out_f,)      SMEM.
    # o_ref: (out_f, TB) VMEM.
    in_f = x_ref.shape[0]
    out_f = o_ref.shape[0]
    # Load each feature row once: (1, TB) vregs, batch across lanes.
    xs = [x_ref[i:i + 1, :] for i in range(in_f)]
    for j in range(out_f):
        acc = xs[0] * w_ref[j, 0]
        for i in range(1, in_f):
            acc = acc + xs[i] * w_ref[j, i]
        o_ref[j:j + 1, :] = (acc + b_ref[j]).astype(o_ref.dtype)


def mynet_forward(x, weight, bias):
    """x: (B, 3) f32; weight: (3, 3) PyTorch layout (out, in); bias: (3,) f32."""
    B, in_f = x.shape
    out_f = weight.shape[0]

    # Lane-dense presentation: batch on the lane (minor) axis.
    x_t = x.T  # (in_f, B) — wrapper-side layout plumbing only.

    if B <= 4096:
        # Small/medium batch: whole arrays resident, gridless launch,
        # weight/bias in SMEM, activations in VMEM.
        y_t = pl.pallas_call(
            linear_vpu_kernel,
            out_shape=jax.ShapeDtypeStruct((out_f, B), x.dtype),
            in_specs=[
                pl.BlockSpec(memory_space=pltpu.MemorySpace.VMEM),
                pl.BlockSpec(memory_space=pltpu.MemorySpace.SMEM),
                pl.BlockSpec(memory_space=pltpu.MemorySpace.SMEM),
            ],
            out_specs=pl.BlockSpec(memory_space=pltpu.MemorySpace.VMEM),
        )(x_t, weight, bias)
    else:
        # Large batch: tile the lane axis; weight/bias stay SMEM-resident and
        # replicated across grid steps. "parallel" lets v7x split the grid
        # across both TensorCores (no effect on v5e/v6e).
        TB = 2048  # (in_f + out_f) * TB * 4 B * 2 buffers ≈ 100 KiB « VMEM on all gens
        y_t = pl.pallas_call(
            linear_vpu_kernel,
            out_shape=jax.ShapeDtypeStruct((out_f, B), x.dtype),
            grid=(pl.cdiv(B, TB),),
            in_specs=[
                pl.BlockSpec((in_f, TB), lambda i: (0, i)),
                pl.BlockSpec(memory_space=pltpu.MemorySpace.SMEM),
                pl.BlockSpec(memory_space=pltpu.MemorySpace.SMEM),
            ],
            out_specs=pl.BlockSpec((out_f, TB), lambda i: (0, i)),
            compiler_params=pltpu.CompilerParams(
                dimension_semantics=("parallel",)),
        )(x_t, weight, bias)

    return y_t.T  # back to (B, out_f)


if __name__ == "__main__":
    key = jax.random.PRNGKey(0)
    kx, kw, kb = jax.random.split(key, 3)

    # Deterministic synthetic parameters matching nn.Linear(3, 3):
    #   weight: (out_features=3, in_features=3), bias: (3,)
    bound = 1.0 / jnp.sqrt(3.0)  # PyTorch default init bound for in_features=3
    weight = jax.random.uniform(kw, (3, 3), jnp.float32, -bound, bound)
    bias = jax.random.uniform(kb, (3,), jnp.float32, -bound, bound)

    # Small input: batch=8, features=3 (matches the module's last-dim=3 contract).
    x = jax.random.normal(kx, (8, 3), jnp.float32)

    y = jax.block_until_ready(mynet_forward(x, weight, bias))

    # Reference check against plain JAX (PyTorch semantics: x @ W.T + b).
    y_ref = x @ weight.T + bias
    assert y.shape == (8, 3)
    assert jnp.allclose(y, y_ref, atol=1e-5, rtol=1e-5), "mismatch vs reference"

    print("KERNEL_OK")
</pallas_src>

<mosaic_0001>
module attributes {stable_mosaic.version = 11 : i64} {
  func.func @linear_vpu_kernel(%arg0: memref<3x8xf32, #tpu.memory_space<vmem>>, %arg1: memref<3x3xf32, #tpu.memory_space<smem>>, %arg2: memref<3xf32, #tpu.memory_space<smem>>, %arg3: memref<3x8xf32, #tpu.memory_space<vmem>>) attributes {dimension_semantics = [], scalar_prefetch = 0 : i64, scratch_operands = 0 : i64, tpu.core_type = #tpu.core_type<tc>} {
    %c0 = arith.constant 0 : index
    %c0_0 = arith.constant 0 : index
    %0 = vector.load %arg0[%c0, %c0_0] : memref<3x8xf32, #tpu.memory_space<vmem>>, vector<1x8xf32>
    %c1 = arith.constant 1 : index
    %c0_1 = arith.constant 0 : index
    %1 = vector.load %arg0[%c1, %c0_1] : memref<3x8xf32, #tpu.memory_space<vmem>>, vector<1x8xf32>
    %c2 = arith.constant 2 : index
    %c0_2 = arith.constant 0 : index
    %2 = vector.load %arg0[%c2, %c0_2] : memref<3x8xf32, #tpu.memory_space<vmem>>, vector<1x8xf32>
    %c0_3 = arith.constant 0 : index
    %c0_4 = arith.constant 0 : index
    %3 = memref.load %arg1[%c0_3, %c0_4] : memref<3x3xf32, #tpu.memory_space<smem>>
    %4 = vector.broadcast %3 : f32 to vector<1x8xf32>
    %5 = arith.mulf %0, %4 : vector<1x8xf32>
    %c0_5 = arith.constant 0 : index
    %c1_6 = arith.constant 1 : index
    %6 = memref.load %arg1[%c0_5, %c1_6] : memref<3x3xf32, #tpu.memory_space<smem>>
    %7 = vector.broadcast %6 : f32 to vector<1x8xf32>
    %8 = arith.mulf %1, %7 : vector<1x8xf32>
    %9 = arith.addf %5, %8 : vector<1x8xf32>
    %c0_7 = arith.constant 0 : index
    %c2_8 = arith.constant 2 : index
    %10 = memref.load %arg1[%c0_7, %c2_8] : memref<3x3xf32, #tpu.memory_space<smem>>
    %11 = vector.broadcast %10 : f32 to vector<1x8xf32>
    %12 = arith.mulf %2, %11 : vector<1x8xf32>
    %13 = arith.addf %9, %12 : vector<1x8xf32>
    %c0_9 = arith.constant 0 : index
    %14 = memref.load %arg2[%c0_9] : memref<3xf32, #tpu.memory_space<smem>>
    %15 = vector.broadcast %14 : f32 to vector<1x8xf32>
    %16 = arith.addf %13, %15 : vector<1x8xf32>
    %c0_10 = arith.constant 0 : index
    %c0_11 = arith.constant 0 : index
    %17 = vector.load %arg3[%c0_10, %c0_11] : memref<3x8xf32, #tpu.memory_space<vmem>>, vector<1x8xf32>
    tpu.vector_store %arg3[%c0_10, %c0_11], %16 {strides = array<i32>} : memref<3x8xf32, #tpu.memory_space<vmem>>, vector<1x8xf32>,
    %c1_12 = arith.constant 1 : index
    %c0_13 = arith.constant 0 : index
    %18 = memref.load %arg1[%c1_12, %c0_13] : memref<3x3xf32, #tpu.memory_space<smem>>
    %19 = vector.broadcast %18 : f32 to vector<1x8xf32>
    %20 = arith.mulf %0, %19 : vector<1x8xf32>
    %c1_14 = arith.constant 1 : index
    %c1_15 = arith.constant 1 : index
    %21 = memref.load %arg1[%c1_14, %c1_15] : memref<3x3xf32, #tpu.memory_space<smem>>
    %22 = vector.broadcast %21 : f32 to vector<1x8xf32>
    %23 = arith.mulf %1, %22 : vector<1x8xf32>
    %24 = arith.addf %20, %23 : vector<1x8xf32>
    %c1_16 = arith.constant 1 : index
    %c2_17 = arith.constant 2 : index
    %25 = memref.load %arg1[%c1_16, %c2_17] : memref<3x3xf32, #tpu.memory_space<smem>>
    %26 = vector.broadcast %25 : f32 to vector<1x8xf32>
    %27 = arith.mulf %2, %26 : vector<1x8xf32>
    %28 = arith.addf %24, %27 : vector<1x8xf32>
    %c1_18 = arith.constant 1 : index
    %29 = memref.load %arg2[%c1_18] : memref<3xf32, #tpu.memory_space<smem>>
    %30 = vector.broadcast %29 : f32 to vector<1x8xf32>
    %31 = arith.addf %28, %30 : vector<1x8xf32>
    %c1_19 = arith.constant 1 : index
    %c0_20 = arith.constant 0 : index
    %32 = vector.load %arg3[%c1_19, %c0_20] : memref<3x8xf32, #tpu.memory_space<vmem>>, vector<1x8xf32>
    tpu.vector_store %arg3[%c1_19, %c0_20], %31 {strides = array<i32>} : memref<3x8xf32, #tpu.memory_space<vmem>>, vector<1x8xf32>,
    %c2_21 = arith.constant 2 : index
    %c0_22 = arith.constant 0 : index
    %33 = memref.load %arg1[%c2_21, %c0_22] : memref<3x3xf32, #tpu.memory_space<smem>>
    %34 = vector.broadcast %33 : f32 to vector<1x8xf32>
    %35 = arith.mulf %0, %34 : vector<1x8xf32>
    %c2_23 = arith.constant 2 : index
    %c1_24 = arith.constant 1 : index
    %36 = memref.load %arg1[%c2_23, %c1_24] : memref<3x3xf32, #tpu.memory_space<smem>>
    %37 = vector.broadcast %36 : f32 to vector<1x8xf32>
    %38 = arith.mulf %1, %37 : vector<1x8xf32>
    %39 = arith.addf %35, %38 : vector<1x8xf32>
    %c2_25 = arith.constant 2 : index
    %c2_26 = arith.constant 2 : index
    %40 = memref.load %arg1[%c2_25, %c2_26] : memref<3x3xf32, #tpu.memory_space<smem>>
    %41 = vector.broadcast %40 : f32 to vector<1x8xf32>
    %42 = arith.mulf %2, %41 : vector<1x8xf32>
    %43 = arith.addf %39, %42 : vector<1x8xf32>
    %c2_27 = arith.constant 2 : index
    %44 = memref.load %arg2[%c2_27] : memref<3xf32, #tpu.memory_space<smem>>
    %45 = vector.broadcast %44 : f32 to vector<1x8xf32>
    %46 = arith.addf %43, %45 : vector<1x8xf32>
    %c2_28 = arith.constant 2 : index
    %c0_29 = arith.constant 0 : index
    %47 = vector.load %arg3[%c2_28, %c0_29] : memref<3x8xf32, #tpu.memory_space<vmem>>, vector<1x8xf32>
    tpu.vector_store %arg3[%c2_28, %c0_29], %46 {strides = array<i32>} : memref<3x8xf32, #tpu.memory_space<vmem>>, vector<1x8xf32>,
    return
  }
}

</mosaic_0001>

<llo_original>
// kernel: tpu_custom_call.1
$region0: #{tpu_custom_call.1}
  #allocation0 [shape = 'u32[]', space=smem, size = 0x4, offset = 0x4, fixed_abs, tag = 'smem constant byte address 0x4 - core index']
  #allocation1 [shape = 'u32[144,128]{1,0:T(1,128)}', space=vmem, size = 0x12000, scoped, tag = 'internal scratch']
  %s0 = inlined_call_operand.hbm [shape: f32[3,8], index: 0, kind: input, shape index: {}]
  %s1 = inlined_call_operand.hbm [shape: f32[3,3], index: 1, kind: input, shape index: {}]
  %s2 = inlined_call_operand.vmem [shape: f32[3], index: 2, kind: input, shape index: {}]
  %s3 = inlined_call_operand.hbm [shape: f32[3,8], index: 3, kind: output, shape index: {}]
  %s4 = sld [smem:[#allocation0]]
  $region34: #{tpu_custom_call.1} parent=0
    _
  %s6 = ssub.s32 1, %s4
  %s7 = scalar_select 0, %s6, %s4
  $region1: #{tpu_custom_call.1} parent=0
    #allocation2 [shape = 'u8[2048]{0}', space=vmem, size = 0x800, scoped, tag = 'input window, operand 0, single buffered']
    #allocation3 [shape = 's32[1]{0}', space=sflag, size = 0x4, scoped, tag = 'scoped memory for tpu_custom_call.1']
    #allocation4 [shape = 's32[1]{0}', space=sflag, size = 0x4, scoped, tag = 'scoped memory for tpu_custom_call.1']
    #allocation5 [shape = 's32[1]{0}', space=sflag, size = 0x4, scoped, tag = 'scoped memory for tpu_custom_call.1']
    #allocation6 [shape = 's32[1]{0}', space=sflag, size = 0x4, scoped, tag = 'scoped memory for tpu_custom_call.1']
    #allocation7 [shape = 'u8[2048]{0}', space=smem, size = 0x800, scoped, tag = 'input window, operand 1, single buffered']
    #allocation8 [shape = 'u8[512]{0}', space=smem, size = 0x200, scoped, tag = 'input window, operand 2, single buffered']
    #allocation9 [shape = 'u8[2048]{0}', space=vmem, size = 0x800, scoped, tag = 'output window, operand 0, single buffered']
    %8 = vsyncpa [#allocation3], 0
    %9 = vsyncpa [#allocation5], 0
    %10 = vsyncpa [#allocation6], 0
    %11 = vsyncpa [#allocation4], 0
    // Predicated region
    $region2: #{tpu_custom_call.1} parent=1 // pred_check
      _
    $region3: #{tpu_custom_call.1} parent=1 // pred_check_branch
      %13 = sbr.rel (0) target = $region5
    $region4: #{tpu_custom_call.1} parent=1 // pred_region
      %s15 = ssub.s32 64, 64
      %16 = vsyncadd [#allocation3], %s15
      %s18 = sshll.u32 [#allocation2], 4
      %s19 = int_to_ptr.vmem [resolvable:$true] %s18
      %21 = dma.hbm_to_vmem [thread:$0]  %s0, 64, %s19, [#allocation3]
    $region5: #{tpu_custom_call.1} parent=1 // pred_fallthru
      _
    // Predicated region
    $region6: #{tpu_custom_call.1} parent=1 // pred_check
      _
    $region7: #{tpu_custom_call.1} parent=1 // pred_check_branch
      %23 = sbr.rel (0) target = $region9
    $region8: #{tpu_custom_call.1} parent=1 // pred_region
      %s25 = ssub.s32 64, 64
      %26 = vsyncadd [#allocation5], %s25
      %29 = dma.hbm_to_smem %s1, 64, [#allocation7], [#allocation5]
    $region9: #{tpu_custom_call.1} parent=1 // pred_fallthru
      _
    // Predicated region
    $region10: #{tpu_custom_call.1} parent=1 // pred_check
      _
    $region11: #{tpu_custom_call.1} parent=1 // pred_check_branch
      %31 = sbr.rel (0) target = $region13
    $region12: #{tpu_custom_call.1} parent=1 // pred_region
      %s33 = ssub.s32 16, 16
      %34 = vsyncadd [#allocation6], %s33
      %s36 = sshll.u32 %s2, 4
      %s37 = int_to_ptr.vmem [resolvable:$true] %s36
      %39 = dma.vmem_to_smem %s37, 16, [#allocation8], [#allocation6]
    $region13: #{tpu_custom_call.1} parent=1 // pred_fallthru
      _
    // Predicated region
    $region14: #{tpu_custom_call.1} parent=1 // pred_check
      _
    $region15: #{tpu_custom_call.1} parent=1 // pred_check_branch
      %41 = sbr.rel (0) target = $region17
    $region16: #{tpu_custom_call.1} parent=1 // pred_region
      %42 = dma.done [#allocation3], 64
    $region17: #{tpu_custom_call.1} parent=1 // pred_fallthru
      _
    // Predicated region
    $region18: #{tpu_custom_call.1} parent=1 // pred_check
      _
    $region19: #{tpu_custom_call.1} parent=1 // pred_check_branch
      %44 = sbr.rel (0) target = $region21
    $region20: #{tpu_custom_call.1} parent=1 // pred_region
      %45 = dma.done [#allocation5], 64
    $region21: #{tpu_custom_call.1} parent=1 // pred_fallthru
      _
    // Predicated region
    $region22: #{tpu_custom_call.1} parent=1 // pred_check
      _
    $region23: #{tpu_custom_call.1} parent=1 // pred_check_branch
      %47 = sbr.rel (0) target = $region25
    $region24: #{tpu_custom_call.1} parent=1 // pred_region
      %48 = dma.done [#allocation6], 16
    $region25: #{tpu_custom_call.1} parent=1 // pred_fallthru
      _
    %49 = sfence
    %v50 = vld [vmem:[#allocation2] sm:$0x1]
    %v51 = vld [vmem:[#allocation2 + $0x1] sm:$0x1]
    %v52 = vld [vmem:[#allocation2 + $0x2] sm:$0x1]
    %s53 = sld [smem:[#allocation7]]
    %v54 = vstv %s53
    %v55 = vmul.f32 %v50, %v54
    %s56 = sld [smem:[#allocation7 + $0x1]]
    %v57 = vstv %s56
    %v58 = vmul.f32 %v51, %v57
    %v59 = vadd.f32 %v55, %v58
    %s60 = sld [smem:[#allocation7 + $0x2]]
    %v61 = vstv %s60
    %v62 = vmul.f32 %v52, %v61
    %v63 = vadd.f32 %v59, %v62
    %s64 = sld [smem:[#allocation8]]
    %v65 = vstv %s64
    %v66 = vadd.f32 %v63, %v65
    %vm67 = vcmask 57344
    %68 = vst.msk [vmem:[#allocation9] sm:$0x1] %vm67, %v66
    %s69 = sld [smem:[#allocation7 + $0x80]]
    %v70 = vstv %s69
    %v71 = vmul.f32 %v50, %v70
    %s72 = sld [smem:[#allocation7 + $0x81]]
    %v73 = vstv %s72
    %v74 = vmul.f32 %v51, %v73
    %v75 = vadd.f32 %v71, %v74
    %s76 = sld [smem:[#allocation7 + $0x82]]
    %v77 = vstv %s76
    %v78 = vmul.f32 %v52, %v77
    %v79 = vadd.f32 %v75, %v78
    %s80 = sld [smem:[#allocation8 + $0x1]]
    %v81 = vstv %s80
    %v82 = vadd.f32 %v79, %v81
    %83 = vst.msk [vmem:[#allocation9 + $0x1] sm:$0x1] %vm67, %v82
    %s84 = sld [smem:[#allocation7 + $0x100]]
    %v85 = vstv %s84
    %v86 = vmul.f32 %v50, %v85
    %s87 = sld [smem:[#allocation7 + $0x101]]
    %v88 = vstv %s87
    %v89 = vmul.f32 %v51, %v88
    %v90 = vadd.f32 %v86, %v89
    %s91 = sld [smem:[#allocation7 + $0x102]]
    %v92 = vstv %s91
    %v93 = vmul.f32 %v52, %v92
    %v94 = vadd.f32 %v90, %v93
    %s95 = sld [smem:[#allocation8 + $0x2]]
    %v96 = vstv %s95
    %v97 = vadd.f32 %v94, %v96
    %98 = vst.msk [vmem:[#allocation9 + $0x2] sm:$0x1] %vm67, %v97
    // Predicated region
    $region26: #{tpu_custom_call.1} parent=1 // pred_check
      _
    $region27: #{tpu_custom_call.1} parent=1 // pred_check_branch
      %100 = sbr.rel (0) target = $region29
    $region28: #{tpu_custom_call.1} parent=1 // pred_region
      %s102 = ssub.s32 64, 64
      %103 = vsyncadd [#allocation4], %s102
      %s105 = sshll.u32 [#allocation9], 4
      %s106 = int_to_ptr.vmem [resolvable:$true] %s105
      %108 = dma.vmem_to_hbm [thread:$0]  %s106, 64, %s3, [#allocation4]
    $region29: #{tpu_custom_call.1} parent=1 // pred_fallthru
      _
    // Predicated region
    $region30: #{tpu_custom_call.1} parent=1 // pred_check
      _
    $region31: #{tpu_custom_call.1} parent=1 // pred_check_branch
      %110 = sbr.rel (0) target = $region33
    $region32: #{tpu_custom_call.1} parent=1 // pred_region
      %111 = dma.done [#allocation4], 64
    $region33: #{tpu_custom_call.1} parent=1 // pred_fallthru
      _
    %112 = vsyncpa [#allocation3], 1
    %113 = vsyncpa [#allocation4], 1
    %114 = vsyncpa [#allocation5], 1
    %115 = vsyncpa [#allocation6], 1

</llo_original>
